<compile_context>
chip_gen: v7x
topology: tpu7x:2x2x1
jax: 0.10.0
libtpu: 0.0.40
codegen_flags: <defaults>
</compile_context>

<pallas_src>
import math

import jax
import jax.numpy as jnp
from jax.experimental import pallas as pl
from jax.experimental.pallas import tpu as pltpu

_LOG_SQRT_2PI = 0.5 * math.log(2.0 * math.pi)
_LANES = 128


def _round_up(n, m):
    return ((n + m - 1) // m) * m


def _actor_critic_kernel(x_ref, w1_ref, w2_ref, wh_ref, misc_ref, mu_ref, v_ref):
    x = x_ref[...]                       # [TB, OBS]  bf16
    misc = misc_ref[...]                 # [8, 128]   f32 (one vreg of constants)
    b1 = misc[0:1, :]                    # b1p || b1v
    b2 = misc[1:2, :]                    # b2p || b2v

    # Fused trunks: Linear -> ReLU -> Linear -> ReLU for BOTH nets in 128 lanes.
    h = jnp.dot(x, w1_ref[...], preferred_element_type=jnp.float32) + b1
    h = jnp.maximum(h, 0.0).astype(jnp.bfloat16)
    h = jnp.dot(h, w2_ref[...], preferred_element_type=jnp.float32) + b2
    h = jnp.maximum(h, 0.0).astype(jnp.bfloat16)

    # Fused head: cols 0:A = mu (policy lanes), col A = value (value lanes).
    head = jnp.dot(h, wh_ref[...], preferred_element_type=jnp.float32)
    na = head.shape[-1]                  # A + 1 (static)
    head = head + misc[2:3, :na]         # only the value column has a bias

    mu_ref[...] = head[:, : na - 1]
    v_ref[...] = head[:, na - 1 : na]


def pack_params(params, lanes=_LANES):
    """Packs per-layer params into lane-dense bf16 slabs + one f32 misc vreg."""
    obs, hid = params["w1p"].shape
    act_dim = params["wmu"].shape[1]
    assert 2 * hid <= lanes, "hidden_size too large for a single 128-lane slab"

    w1 = jnp.zeros((obs, lanes), jnp.float32)
    w1 = w1.at[:, :hid].set(params["w1p"]).at[:, hid:2 * hid].set(params["w1v"])

    w2 = jnp.zeros((lanes, lanes), jnp.float32)
    w2 = w2.at[:hid, :hid].set(params["w2p"])
    w2 = w2.at[hid:2 * hid, hid:2 * hid].set(params["w2v"])

    wh = jnp.zeros((lanes, act_dim + 1), jnp.float32)
    wh = wh.at[:hid, :act_dim].set(params["wmu"])            # mu columns
    wh = wh.at[hid:2 * hid, act_dim].set(params["w3v"][:, 0])  # value column

    misc = jnp.zeros((8, lanes), jnp.float32)
    misc = misc.at[0, :hid].set(params["b1p"][0]).at[0, hid:2 * hid].set(params["b1v"][0])
    misc = misc.at[1, :hid].set(params["b2p"][0]).at[1, hid:2 * hid].set(params["b2v"][0])
    misc = misc.at[2, act_dim].set(params["b3v"][0, 0])       # value bias

    std = jnp.exp(params["log_std"][0])                                   # [A]
    logp_const = -(jnp.sum(params["log_std"]) + act_dim * _LOG_SQRT_2PI)  # scalar

    return dict(w1=w1.astype(jnp.bfloat16),
                w2=w2.astype(jnp.bfloat16),
                wh=wh.astype(jnp.bfloat16),
                misc=misc, std=std, logp_const=logp_const,
                act_dim=act_dim, lanes=lanes)


def actor_critic_forward(packed, x, act=None, *, eps=None, deterministic=False,
                         batch_tile=4096):
    """Fused forward.  Returns (mu, std, pi_action, value, logp_a) matching the
    torch module (value squeezed to [B], logp summed over the action axis)."""
    B, obs = x.shape
    A = packed["act_dim"]
    lanes = packed["lanes"]

    if x.dtype != jnp.bfloat16:
        x = x.astype(jnp.bfloat16)

    # Batch tile: big (amortizes ~0.35 us/step overhead), multiple of 8, but
    # capped so large batches still give >= 2 grid steps (v7x has 2 TCs).
    if B >= 8:
        tb = max(8, min(batch_tile, B))
        if B >= 16:
            tb = min(tb, _round_up(pl.cdiv(B, 2), 8))
        tb = (tb // 8) * 8
    else:
        tb = B  # tiny batch: one full-batch tile (block dim == array dim)
    grid = (pl.cdiv(B, tb),)

    flops = 2 * B * (obs * lanes + lanes * lanes + lanes * (A + 1)) + 4 * B * lanes
    bytes_accessed = (2 * B * obs                                       # x (bf16)
                      + 2 * (obs * lanes + lanes * lanes + lanes * (A + 1))  # weights
                      + 4 * 8 * lanes                                   # misc
                      + 4 * B * (A + 1))                                # outputs

    mu, v = pl.pallas_call(
        _actor_critic_kernel,
        out_shape=(jax.ShapeDtypeStruct((B, A), jnp.float32),
                   jax.ShapeDtypeStruct((B, 1), jnp.float32)),
        grid=grid,
        in_specs=[
            pl.BlockSpec((tb, obs), lambda i: (i, 0)),         # x      (batch-tiled)
            pl.BlockSpec((obs, lanes), lambda i: (0, 0)),      # W1cat  (resident)
            pl.BlockSpec((lanes, lanes), lambda i: (0, 0)),    # W2cat  (resident)
            pl.BlockSpec((lanes, A + 1), lambda i: (0, 0)),    # Whead  (resident)
            pl.BlockSpec((8, lanes), lambda i: (0, 0)),        # misc   (resident)
        ],
        out_specs=(pl.BlockSpec((tb, A), lambda i: (i, 0)),
                   pl.BlockSpec((tb, 1), lambda i: (i, 0))),
        compiler_params=pltpu.CompilerParams(
            dimension_semantics=("parallel",)),
        cost_estimate=pl.CostEstimate(
            flops=flops, transcendentals=0, bytes_accessed=bytes_accessed),
    )(x, packed["w1"], packed["w2"], packed["wh"], packed["misc"])

    value = v[:, 0]
    std = packed["std"]
    logp_const = packed["logp_const"]

    # pi_action: mean if deterministic, else reparameterized sample mu + std*eps.
    if deterministic or eps is None:
        pi_action = mu
    else:
        pi_action = mu + std * eps

    # logp_a: of `act` if provided, otherwise of pi_action (torch semantics).
    if act is not None:
        z = (act - mu) / std
        logp = logp_const - 0.5 * jnp.sum(z * z, axis=-1)
    elif deterministic or eps is None:
        logp = jnp.full((B,), logp_const, jnp.float32)        # log-prob of the mean
    else:
        logp = logp_const - 0.5 * jnp.sum(eps * eps, axis=-1)

    return mu, std, pi_action, value, logp


def init_params(key, obs_size, action_size, hidden_size=64):
    """Synthetic init matching the PyTorch module's shapes.
    Weights are stored as [in, out] (transposed from torch's [out, in])."""
    def linear(k, fan_in, fan_out):
        kw, kb = jax.random.split(k)
        bound = 1.0 / math.sqrt(fan_in)
        w = jax.random.uniform(kw, (fan_in, fan_out), jnp.float32, -bound, bound)
        b = jax.random.uniform(kb, (1, fan_out), jnp.float32, -bound, bound)
        return w, b

    ks = jax.random.split(key, 6)
    w1p, b1p = linear(ks[0], obs_size, hidden_size)
    w2p, b2p = linear(ks[1], hidden_size, hidden_size)
    w1v, b1v = linear(ks[2], obs_size, hidden_size)
    w2v, b2v = linear(ks[3], hidden_size, hidden_size)
    w3v, b3v = linear(ks[4], hidden_size, 1)
    wmu, _ = linear(ks[5], hidden_size, action_size)      # mu_layer has no bias
    log_std = jnp.full((1, action_size), -0.5, jnp.float32)

    return dict(w1p=w1p, b1p=b1p, w2p=w2p, b2p=b2p,
                wmu=wmu, log_std=log_std,
                w1v=w1v, b1v=b1v, w2v=w2v, b2v=b2v, w3v=w3v, b3v=b3v)


def _reference(params, x, eps, act=None):
    """Pure-JAX f32 reference of the torch forward."""
    h = jnp.maximum(x @ params["w1p"] + params["b1p"], 0.0)
    z = jnp.maximum(h @ params["w2p"] + params["b2p"], 0.0)
    mu = z @ params["wmu"]
    std = jnp.exp(params["log_std"][0])
    a = mu + std * eps
    tgt = a if act is None else act
    per = -0.5 * ((tgt - mu) / std) ** 2 - params["log_std"] - _LOG_SQRT_2PI
    logp = jnp.sum(per, axis=-1)
    hv = jnp.maximum(x @ params["w1v"] + params["b1v"], 0.0)
    hv = jnp.maximum(hv @ params["w2v"] + params["b2v"], 0.0)
    v = (hv @ params["w3v"] + params["b3v"])[:, 0]
    return mu, std, a, v, logp


if __name__ == "__main__":
    B, OBS, ACT, HID = 8, 32, 8, 64

    key = jax.random.PRNGKey(0)
    kp, kx, ke, ka = jax.random.split(key, 4)

    params = init_params(kp, OBS, ACT, HID)
    packed = pack_params(params)

    x = jax.random.normal(kx, (B, OBS), jnp.float32)
    eps = jax.random.normal(ke, (B, ACT), jnp.float32)

    # stochastic path (deterministic=False, act=None)
    mu, std, a, value, logp = actor_critic_forward(packed, x, eps=eps,
                                                   deterministic=False)
    jax.block_until_ready((mu, std, a, value, logp))

    assert mu.shape == (B, ACT) and a.shape == (B, ACT)
    assert value.shape == (B,) and logp.shape == (B,) and std.shape == (ACT,)

    # correctness vs f32 reference (bf16 matmul path -> loose tolerance)
    rmu, rstd, ra, rv, rlogp = _reference(params, x, eps)
    tol = dict(atol=3e-2, rtol=3e-2)
    assert jnp.allclose(mu, rmu, **tol)
    assert jnp.allclose(std, rstd, **tol)
    assert jnp.allclose(a, ra, **tol)
    assert jnp.allclose(value, rv, **tol)
    assert jnp.allclose(logp, rlogp, **tol)

    # deterministic path: action is the mean, logp is the constant log N(mu|mu,std)
    mu_d, _, a_d, v_d, lp_d = actor_critic_forward(packed, x, deterministic=True)
    jax.block_until_ready((mu_d, a_d, v_d, lp_d))
    assert jnp.allclose(a_d, mu_d)
    assert jnp.allclose(lp_d, jnp.full((B,), packed["logp_const"]))

    # user-provided act path (PPO-style log-prob query)
    act_q = jax.random.normal(ka, (B, ACT), jnp.float32)
    _, _, _, _, logp_q = actor_critic_forward(packed, x, act=act_q,
                                              deterministic=True)
    _, _, _, _, rlogp_q = _reference(params, x, jnp.zeros_like(eps), act=act_q)
    assert jnp.allclose(logp_q, rlogp_q, **tol)

    print("KERNEL_OK")
</pallas_src>

<mosaic_0001>
module attributes {stable_mosaic.version = 11 : i64} {
  func.func @_actor_critic_kernel(%arg0: i32, %arg1: memref<8x32xbf16, #tpu.memory_space<vmem>>, %arg2: memref<32x128xbf16, #tpu.memory_space<vmem>>, %arg3: memref<128x128xbf16, #tpu.memory_space<vmem>>, %arg4: memref<128x9xbf16, #tpu.memory_space<vmem>>, %arg5: memref<8x128xf32, #tpu.memory_space<vmem>>, %arg6: memref<8x8xf32, #tpu.memory_space<vmem>>, %arg7: memref<8x1xf32, #tpu.memory_space<vmem>>) attributes {dimension_semantics = [#tpu.dimension_semantics<parallel>], iteration_bounds = array<i64: 1>, scalar_prefetch = 0 : i64, scratch_operands = 0 : i64, tpu.core_type = #tpu.core_type<tc>, window_params = [{transform_indices = @transform_0, window_bounds = array<i64: 8, 32>}, {pipeline_mode = #tpu.pipeline_mode<synchronous>, transform_indices = @transform_1, window_bounds = array<i64: 32, 128>}, {pipeline_mode = #tpu.pipeline_mode<synchronous>, transform_indices = @transform_2, window_bounds = array<i64: 128, 128>}, {pipeline_mode = #tpu.pipeline_mode<synchronous>, transform_indices = @transform_3, window_bounds = array<i64: 128, 9>}, {pipeline_mode = #tpu.pipeline_mode<synchronous>, transform_indices = @transform_4, window_bounds = array<i64: 8, 128>}, {transform_indices = @transform_5, window_bounds = array<i64: 8, 8>}, {transform_indices = @transform_6, window_bounds = array<i64: 8, 1>}]} {
    %c0 = arith.constant 0 : index
    %c0_0 = arith.constant 0 : index
    %0 = vector.load %arg1[%c0, %c0_0] : memref<8x32xbf16, #tpu.memory_space<vmem>>, vector<8x32xbf16>
    %c0_1 = arith.constant 0 : index
    %c0_2 = arith.constant 0 : index
    %1 = vector.load %arg5[%c0_1, %c0_2] : memref<8x128xf32, #tpu.memory_space<vmem>>, vector<8x128xf32>
    %2 = vector.extract_strided_slice %1 {offsets = [0, 0], sizes = [1, 128], strides = [1, 1]} : vector<8x128xf32> to vector<1x128xf32>
    %3 = vector.extract_strided_slice %1 {offsets = [1, 0], sizes = [1, 128], strides = [1, 1]} : vector<8x128xf32> to vector<1x128xf32>
    %c0_3 = arith.constant 0 : index
    %c0_4 = arith.constant 0 : index
    %4 = vector.load %arg2[%c0_3, %c0_4] : memref<32x128xbf16, #tpu.memory_space<vmem>>, vector<32x128xbf16>
    %cst = arith.constant dense<0.000000e+00> : vector<8x128xf32>
    %5 = tpu.matmul %0, %4, %cst {dimension_numbers = #tpu.dot_dimension_numbers<[1], [0], [0], [1], [0, 0, 1, 1], [], []>} : vector<8x32xbf16>, vector<32x128xbf16>, vector<8x128xf32> -> vector<8x128xf32>
    %6 = vector.broadcast %2 : vector<1x128xf32> to vector<8x128xf32>
    %7 = arith.addf %5, %6 : vector<8x128xf32>
    %cst_5 = arith.constant 0.000000e+00 : f32
    %8 = vector.broadcast %cst_5 : f32 to vector<8x128xf32>
    %9 = arith.maximumf %7, %8 : vector<8x128xf32>
    %10 = arith.truncf %9 : vector<8x128xf32> to vector<8x128xbf16>
    %c0_6 = arith.constant 0 : index
    %c0_7 = arith.constant 0 : index
    %11 = vector.load %arg3[%c0_6, %c0_7] : memref<128x128xbf16, #tpu.memory_space<vmem>>, vector<128x128xbf16>
    %cst_8 = arith.constant dense<0.000000e+00> : vector<8x128xf32>
    %12 = tpu.matmul %10, %11, %cst_8 {dimension_numbers = #tpu.dot_dimension_numbers<[1], [0], [0], [1], [0, 0, 1, 1], [], []>} : vector<8x128xbf16>, vector<128x128xbf16>, vector<8x128xf32> -> vector<8x128xf32>
    %13 = vector.broadcast %3 : vector<1x128xf32> to vector<8x128xf32>
    %14 = arith.addf %12, %13 : vector<8x128xf32>
    %cst_9 = arith.constant 0.000000e+00 : f32
    %15 = vector.broadcast %cst_9 : f32 to vector<8x128xf32>
    %16 = arith.maximumf %14, %15 : vector<8x128xf32>
    %17 = arith.truncf %16 : vector<8x128xf32> to vector<8x128xbf16>
    %c0_10 = arith.constant 0 : index
    %c0_11 = arith.constant 0 : index
    %18 = vector.load %arg4[%c0_10, %c0_11] : memref<128x9xbf16, #tpu.memory_space<vmem>>, vector<128x9xbf16>
    %cst_12 = arith.constant dense<0.000000e+00> : vector<8x9xf32>
    %19 = tpu.matmul %17, %18, %cst_12 {dimension_numbers = #tpu.dot_dimension_numbers<[1], [0], [0], [1], [0, 0, 1, 1], [], []>} : vector<8x128xbf16>, vector<128x9xbf16>, vector<8x9xf32> -> vector<8x9xf32>
    %20 = vector.extract_strided_slice %1 {offsets = [2, 0], sizes = [1, 9], strides = [1, 1]} : vector<8x128xf32> to vector<1x9xf32>
    %21 = vector.broadcast %20 : vector<1x9xf32> to vector<8x9xf32>
    %22 = arith.addf %19, %21 : vector<8x9xf32>
    %23 = vector.extract_strided_slice %22 {offsets = [0, 0], sizes = [8, 8], strides = [1, 1]} : vector<8x9xf32> to vector<8x8xf32>
    %c0_13 = arith.constant 0 : index
    %c0_14 = arith.constant 0 : index
    %24 = vector.load %arg6[%c0_13, %c0_14] : memref<8x8xf32, #tpu.memory_space<vmem>>, vector<8x8xf32>
    tpu.vector_store %arg6[%c0_13, %c0_14], %23 {strides = array<i32>} : memref<8x8xf32, #tpu.memory_space<vmem>>, vector<8x8xf32>,
    %25 = vector.extract_strided_slice %22 {offsets = [0, 8], sizes = [8, 1], strides = [1, 1]} : vector<8x9xf32> to vector<8x1xf32>
    %c0_15 = arith.constant 0 : index
    %c0_16 = arith.constant 0 : index
    %26 = vector.load %arg7[%c0_15, %c0_16] : memref<8x1xf32, #tpu.memory_space<vmem>>, vector<8x1xf32>
    tpu.vector_store %arg7[%c0_15, %c0_16], %25 {strides = array<i32>} : memref<8x1xf32, #tpu.memory_space<vmem>>, vector<8x1xf32>,
    return
  }
  func.func @transform_0(%arg0: i32) -> (i32, i32) {
    %c0_i32 = arith.constant 0 : i32
    %c0_i32_0 = arith.constant 0 : i32
    return %arg0, %c0_i32 : i32, i32
  }
  func.func @transform_1(%arg0: i32) -> (i32, i32) {
    %c0_i32 = arith.constant 0 : i32
    %c0_i32_0 = arith.constant 0 : i32
    %c0_i32_1 = arith.constant 0 : i32
    return %c0_i32, %c0_i32_0 : i32, i32
  }
  func.func @transform_2(%arg0: i32) -> (i32, i32) {
    %c0_i32 = arith.constant 0 : i32
    %c0_i32_0 = arith.constant 0 : i32
    %c0_i32_1 = arith.constant 0 : i32
    return %c0_i32, %c0_i32_0 : i32, i32
  }
  func.func @transform_3(%arg0: i32) -> (i32, i32) {
    %c0_i32 = arith.constant 0 : i32
    %c0_i32_0 = arith.constant 0 : i32
    %c0_i32_1 = arith.constant 0 : i32
    return %c0_i32, %c0_i32_0 : i32, i32
  }
  func.func @transform_4(%arg0: i32) -> (i32, i32) {
    %c0_i32 = arith.constant 0 : i32
    %c0_i32_0 = arith.constant 0 : i32
    %c0_i32_1 = arith.constant 0 : i32
    return %c0_i32, %c0_i32_0 : i32, i32
  }
  func.func @transform_5(%arg0: i32) -> (i32, i32) {
    %c0_i32 = arith.constant 0 : i32
    %c0_i32_0 = arith.constant 0 : i32
    return %arg0, %c0_i32 : i32, i32
  }
  func.func @transform_6(%arg0: i32) -> (i32, i32) {
    %c0_i32 = arith.constant 0 : i32
    %c0_i32_0 = arith.constant 0 : i32
    return %arg0, %c0_i32 : i32, i32
  }
}

</mosaic_0001>

<llo_original>
// kernel: tpu_custom_call.1
$region0: #{tpu_custom_call.1}
  #allocation0 [shape = 'u32[]', space=smem, size = 0x4, offset = 0x4, fixed_abs, tag = 'smem constant byte address 0x4 - core index']
  #allocation1 [shape = 'u32[144,128]{1,0:T(1,128)}', space=vmem, size = 0x12000, scoped, tag = 'internal scratch']
  %s0 = inlined_call_operand.hbm [shape: bf16[8,32], index: 0, kind: input, shape index: {}]
  %s1 = inlined_call_operand.hbm [shape: bf16[32,128], index: 1, kind: input, shape index: {}]
  %s2 = inlined_call_operand.vmem [shape: bf16[128,128], index: 2, kind: input, shape index: {}]
  %s3 = inlined_call_operand.vmem [shape: bf16[128,9], index: 3, kind: input, shape index: {}]
  %s4 = inlined_call_operand.vmem [shape: f32[8,128], index: 4, kind: input, shape index: {}]
  %s5 = inlined_call_operand.hbm [shape: f32[8,8], index: 5, kind: output, shape index: {0}]
  %s6 = inlined_call_operand.vmem [shape: f32[8,1], index: 6, kind: output, shape index: {1}]
  %7 = xla_tuple %s5, %s6
  %s8 = sld [smem:[#allocation0]]
  $region46: #{tpu_custom_call.1} parent=0
    _
  %s10 = ssub.s32 1, %s8
  %s11 = scalar_select 0, %s10, %s8
  $region1: #{tpu_custom_call.1} parent=0
    #allocation2 [shape = 'u8[2048]{0}', space=vmem, size = 0x800, scoped, tag = 'input window, operand 0, single buffered']
    #allocation3 [shape = 's32[1]{0}', space=sflag, size = 0x4, scoped, tag = 'scoped memory for tpu_custom_call.1']
    #allocation4 [shape = 's32[1]{0}', space=sflag, size = 0x4, scoped, tag = 'scoped memory for tpu_custom_call.1']
    #allocation5 [shape = 'u8[8192]{0}', space=vmem, size = 0x2000, scoped, tag = 'input window, operand 1, single buffered']
    #allocation6 [shape = 's32[1]{0}', space=sflag, size = 0x4, scoped, tag = 'scoped memory for tpu_custom_call.1']
    #allocation7 [shape = 'u8[4096]{0}', space=vmem, size = 0x1000, scoped, tag = 'output window, operand 0, single buffered']
    %12 = vsyncpa [#allocation3], 0
    %13 = vsyncpa [#allocation6], 0
    %14 = vsyncpa [#allocation4], 0
    // Predicated region
    $region2: #{tpu_custom_call.1} parent=1 // pred_check
      _
    $region3: #{tpu_custom_call.1} parent=1 // pred_check_branch
      %16 = sbr.rel (0) target = $region5
    $region4: #{tpu_custom_call.1} parent=1 // pred_region
      %s18 = ssub.s32 64, 64
      %19 = vsyncadd [#allocation3], %s18
      %s21 = sshll.u32 [#allocation2], 4
      %s22 = int_to_ptr.vmem [resolvable:$true] %s21
      %24 = dma.hbm_to_vmem [thread:$0]  %s0, 64, %s22, [#allocation3]
    $region5: #{tpu_custom_call.1} parent=1 // pred_fallthru
      _
    // Predicated region
    $region6: #{tpu_custom_call.1} parent=1 // pred_check
      _
    $region7: #{tpu_custom_call.1} parent=1 // pred_check_branch
      %26 = sbr.rel (0) target = $region9
    $region8: #{tpu_custom_call.1} parent=1 // pred_region
      %s28 = ssub.s32 256, 256
      %29 = vsyncadd [#allocation6], %s28
      %s30 = sshll.u32 [#allocation5], 4
      %s31 = int_to_ptr.vmem [resolvable:$true] %s30
      %36 = dma.hbm_to_vmem [thread:$0]  %s1, 256, %s31, [#allocation6], 64, 64, 4
    $region9: #{tpu_custom_call.1} parent=1 // pred_fallthru
      _
    // Predicated region
    $region10: #{tpu_custom_call.1} parent=1 // pred_check
      _
    $region11: #{tpu_custom_call.1} parent=1 // pred_check_branch
      %38 = sbr.rel (0) target = $region13
    $region12: #{tpu_custom_call.1} parent=1 // pred_region
      _
    $region13: #{tpu_custom_call.1} parent=1 // pred_fallthru
      _
    // Predicated region
    $region14: #{tpu_custom_call.1} parent=1 // pred_check
      _
    $region15: #{tpu_custom_call.1} parent=1 // pred_check_branch
      %40 = sbr.rel (0) target = $region17
    $region16: #{tpu_custom_call.1} parent=1 // pred_region
      _
    $region17: #{tpu_custom_call.1} parent=1 // pred_fallthru
      _
    // Predicated region
    $region18: #{tpu_custom_call.1} parent=1 // pred_check
      _
    $region19: #{tpu_custom_call.1} parent=1 // pred_check_branch
      %42 = sbr.rel (0) target = $region21
    $region20: #{tpu_custom_call.1} parent=1 // pred_region
      _
    $region21: #{tpu_custom_call.1} parent=1 // pred_fallthru
      _
    // Predicated region
    $region22: #{tpu_custom_call.1} parent=1 // pred_check
      _
    $region23: #{tpu_custom_call.1} parent=1 // pred_check_branch
      %44 = sbr.rel (0) target = $region25
    $region24: #{tpu_custom_call.1} parent=1 // pred_region
      %45 = dma.done [#allocation3], 64
    $region25: #{tpu_custom_call.1} parent=1 // pred_fallthru
      _
    // Predicated region
    $region26: #{tpu_custom_call.1} parent=1 // pred_check
      _
    $region27: #{tpu_custom_call.1} parent=1 // pred_check_branch
      %47 = sbr.rel (0) target = $region29
    $region28: #{tpu_custom_call.1} parent=1 // pred_region
      %48 = dma.done [#allocation6], 256
    $region29: #{tpu_custom_call.1} parent=1 // pred_fallthru
      _
    %v50 = vld [vmem:[#allocation2] sm:$0xf]
    %v51 = vld [vmem:[%s4] sm:$0xff]
    %v52 = vld [vmem:[#allocation5] sm:$0xf]
    %v53 = vld [vmem:[#allocation5 + $0x4] sm:$0xf]
    %v54 = vld [vmem:[#allocation5 + $0x8] sm:$0xf]
    %v55 = vld [vmem:[#allocation5 + $0xc] sm:$0xf]
    %v56 = vlaneseq
    %v57 = vshrl.u32 %v56, 7
    %v58 = vsub.s32 0, %v57
    %v59 = vrot.slane %v51, %v58
    %v64 = vunpack.c.l.b16 %v52
    %v65 = vunpack.c.l.b16 %v53
    %v66 = vunpack.c.l.b16 %v54
    %v67 = vunpack.c.l.b16 %v55
    %v68 = vpack.c.b16 %v65, %v64
    %v69 = vpack.c.b16 %v67, %v66
    %vm72 = vcmask 261120
    %v74 = vsel %vm72, %v50, 0
    %76 = vmatprep.subr.bf16.mxu0 0
    %77 = vmatpush1.bf16.msra.mxu0 %v68
    %78 = vmatprep.subr.bf16.mxu0 0
    %79 = vmatpush1.bf16.msra.mxu0 %v69
    %80 = vmatprep.subr.bf16.mxu0 0
    %81 = vmatpush1.bf16.msra.mxu0 0
    %82 = vmatprep.subr.bf16.mxu0 0
    %83 = vmatpush1.bf16.msra.mxu0 0
    %84 = vmatprep.subr.bf16.mxu0 0
    %85 = vmatpush1.bf16.msra.mxu0 0
    %86 = vmatprep.subr.bf16.mxu0 0
    %87 = vmatpush1.bf16.msra.mxu0 0
    %88 = vmatprep.subr.bf16.mxu0 0
    %89 = vmatpush1.bf16.msra.mxu0 0
    %90 = vmatprep.subr.bf16.mxu0 0
    %91 = vmatpush1.bf16.msra.mxu0 0
    %92 = vmatprep.subr.bf16.mxu0 0
    %93 = vmatpush1.bf16.msra.mxu0 0
    %94 = vmatprep.subr.bf16.mxu0 0
    %95 = vmatpush1.bf16.msra.mxu0 0
    %96 = vmatprep.subr.bf16.mxu0 0
    %97 = vmatpush1.bf16.msra.mxu0 0
    %98 = vmatprep.subr.bf16.mxu0 0
    %99 = vmatpush1.bf16.msra.mxu0 0
    %100 = vmatprep.subr.bf16.mxu0 0
    %101 = vmatpush1.bf16.msra.mxu0 0
    %102 = vmatprep.subr.bf16.mxu0 0
    %103 = vmatpush1.bf16.msra.mxu0 0
    %104 = vmatprep.subr.bf16.mxu0 0
    %105 = vmatpush1.bf16.msra.mxu0 0
    %106 = vmatprep.subr.bf16.mxu0 0
    %107 = vmatpush1.bf16.msra.mxu0 0
    %108 = vmatprep.mubr.bf16.mxu0 0
    %109 = vmatmul.mubr.bf16.gmra.mrb[0].mxu0 %v74
    %v110 = vpop.f32.mrb[0].mxu0
    %v111 = vadd.f32 %v59, %v110
    %v112 = vpop.f32.mrb[0].mxu0
    %v113 = vpop.f32.mrb[0].mxu0
    %v114 = vpop.f32.mrb[0].mxu0
    %115 = vdwg.mxu0
    %v116 = vmax.f32 %v111, 0.0
    %v117 = vpack.c.bf16 %v116, %v116
    %v118 = vld [vmem:[%s2] sm:$0xf]
    %v119 = vld [vmem:[%s2 + $0x4] sm:$0xf]
    %v120 = vld [vmem:[%s2 + $0x8] sm:$0xf]
    %v121 = vld [vmem:[%s2 + $0xc] sm:$0xf]
    %v122 = vld [vmem:[%s2 + $0x10] sm:$0xf]
    %v123 = vld [vmem:[%s2 + $0x14] sm:$0xf]
    %v124 = vld [vmem:[%s2 + $0x18] sm:$0xf]
    %v125 = vld [vmem:[%s2 + $0x1c] sm:$0xf]
    %v126 = vld [vmem:[%s2 + $0x20] sm:$0xf]
    %v127 = vld [vmem:[%s2 + $0x24] sm:$0xf]
    %v128 = vld [vmem:[%s2 + $0x28] sm:$0xf]
    %v129 = vld [vmem:[%s2 + $0x2c] sm:$0xf]
    %v130 = vld [vmem:[%s2 + $0x30] sm:$0xf]
    %v131 = vld [vmem:[%s2 + $0x34] sm:$0xf]
    %v132 = vld [vmem:[%s2 + $0x38] sm:$0xf]
    %v133 = vld [vmem:[%s2 + $0x3c] sm:$0xf]
    %v134 = vlaneseq
    %v135 = vshrl.u32 %v134, 7
    %v136 = vsub.s32 1, %v135
    %v137 = vrot.slane %v51, %v136
    %v154 = vunpack.c.l.b16 %v118
    %v155 = vunpack.c.l.b16 %v119
    %v156 = vunpack.c.l.b16 %v120
    %v157 = vunpack.c.l.b16 %v121
    %v158 = vunpack.c.l.b16 %v122
    %v159 = vunpack.c.l.b16 %v123
    %v160 = vunpack.c.l.b16 %v124
    %v161 = vunpack.c.l.b16 %v125
    %v162 = vunpack.c.l.b16 %v126
    %v163 = vunpack.c.l.b16 %v127
    %v164 = vunpack.c.l.b16 %v128
    %v165 = vunpack.c.l.b16 %v129
    %v166 = vunpack.c.l.b16 %v130
    %v167 = vunpack.c.l.b16 %v131
    %v168 = vunpack.c.l.b16 %v132
    %v169 = vunpack.c.l.b16 %v133
    %v170 = vpack.c.b16 %v155, %v154
    %v171 = vpack.c.b16 %v157, %v156
    %v172 = vpack.c.b16 %v159, %v158
    %v173 = vpack.c.b16 %v161, %v160
    %v174 = vpack.c.b16 %v163, %v162
    %v175 = vpack.c.b16 %v165, %v164
    %v176 = vpack.c.b16 %v167, %v166
    %v177 = vpack.c.b16 %v169, %v168
    %186 = vmatprep.subr.bf16.mxu0 0
    %187 = vmatpush1.bf16.msra.mxu0 %v170
    %188 = vmatprep.subr.bf16.mxu0 0
    %189 = vmatpush1.bf16.msra.mxu0 %v171
    %190 = vmatprep.subr.bf16.mxu0 0
    %191 = vmatpush1.bf16.msra.mxu0 %v172
    %192 = vmatprep.subr.bf16.mxu0 0
    %193 = vmatpush1.bf16.msra.mxu0 %v173
    %194 = vmatprep.subr.bf16.mxu0 0
    %195 = vmatpush1.bf16.msra.mxu0 %v174
    %196 = vmatprep.subr.bf16.mxu0 0
    %197 = vmatpush1.bf16.msra.mxu0 %v175
    %198 = vmatprep.subr.bf16.mxu0 0
    %199 = vmatpush1.bf16.msra.mxu0 %v176
    %200 = vmatprep.subr.bf16.mxu0 0
    %201 = vmatpush1.bf16.msra.mxu0 %v177
    %202 = vmatprep.subr.bf16.mxu0 0
    %203 = vmatpush1.bf16.msra.mxu0 0
    %204 = vmatprep.subr.bf16.mxu0 0
    %205 = vmatpush1.bf16.msra.mxu0 0
    %206 = vmatprep.subr.bf16.mxu0 0
    %207 = vmatpush1.bf16.msra.mxu0 0
    %208 = vmatprep.subr.bf16.mxu0 0
    %209 = vmatpush1.bf16.msra.mxu0 0
    %210 = vmatprep.subr.bf16.mxu0 0
    %211 = vmatpush1.bf16.msra.mxu0 0
    %212 = vmatprep.subr.bf16.mxu0 0
    %213 = vmatpush1.bf16.msra.mxu0 0
    %214 = vmatprep.subr.bf16.mxu0 0
    %215 = vmatpush1.bf16.msra.mxu0 0
    %216 = vmatprep.subr.bf16.mxu0 0
    %217 = vmatpush1.bf16.msra.mxu0 0
    %218 = vmatprep.mubr.bf16.mxu0 0
    %219 = vmatmul.mubr.bf16.gmra.mrb[0].mxu0 %v117
    %v220 = vpop.f32.mrb[0].mxu0
    %v221 = vadd.f32 %v137, %v220
    %v222 = vpop.f32.mrb[0].mxu0
    %v223 = vpop.f32.mrb[0].mxu0
    %v224 = vpop.f32.mrb[0].mxu0
    %225 = vdwg.mxu0
    %v226 = vmax.f32 %v221, 0.0
    %v227 = vpack.c.bf16 %v226, %v226
    %v228 = vld [vmem:[%s3] sm:$0xf]
    %v229 = vld [vmem:[%s3 + $0x4] sm:$0xf]
    %v230 = vld [vmem:[%s3 + $0x8] sm:$0xf]
    %v231 = vld [vmem:[%s3 + $0xc] sm:$0xf]
    %v232 = vld [vmem:[%s3 + $0x10] sm:$0xf]
    %v233 = vld [vmem:[%s3 + $0x14] sm:$0xf]
    %v234 = vld [vmem:[%s3 + $0x18] sm:$0xf]
    %v235 = vld [vmem:[%s3 + $0x1c] sm:$0xf]
    %v236 = vld [vmem:[%s3 + $0x20] sm:$0xf]
    %v237 = vld [vmem:[%s3 + $0x24] sm:$0xf]
    %v238 = vld [vmem:[%s3 + $0x28] sm:$0xf]
    %v239 = vld [vmem:[%s3 + $0x2c] sm:$0xf]
    %v240 = vld [vmem:[%s3 + $0x30] sm:$0xf]
    %v241 = vld [vmem:[%s3 + $0x34] sm:$0xf]
    %v242 = vld [vmem:[%s3 + $0x38] sm:$0xf]
    %v243 = vld [vmem:[%s3 + $0x3c] sm:$0xf]
    %v244 = vlaneseq
    %v245 = vshrl.u32 %v244, 7
    %v246 = vsub.s32 2, %v245
    %v247 = vrot.slane %v51, %v246
    %v264 = vunpack.c.l.b16 %v228
    %v265 = vunpack.c.l.b16 %v229
    %v266 = vunpack.c.l.b16 %v230
    %v267 = vunpack.c.l.b16 %v231
    %v268 = vunpack.c.l.b16 %v232
    %v269 = vunpack.c.l.b16 %v233
    %v270 = vunpack.c.l.b16 %v234
    %v271 = vunpack.c.l.b16 %v235
    %v272 = vunpack.c.l.b16 %v236
    %v273 = vunpack.c.l.b16 %v237
    %v274 = vunpack.c.l.b16 %v238
    %v275 = vunpack.c.l.b16 %v239
    %v276 = vunpack.c.l.b16 %v240
    %v277 = vunpack.c.l.b16 %v241
    %v278 = vunpack.c.l.b16 %v242
    %v279 = vunpack.c.l.b16 %v243
    %v280 = vpack.c.b16 %v265, %v264
    %v281 = vpack.c.b16 %v267, %v266
    %v282 = vpack.c.b16 %v269, %v268
    %v283 = vpack.c.b16 %v271, %v270
    %v284 = vpack.c.b16 %v273, %v272
    %v285 = vpack.c.b16 %v275, %v274
    %v286 = vpack.c.b16 %v277, %v276
    %v287 = vpack.c.b16 %v279, %v278
    %296 = vmatprep.subr.bf16.mxu0 0
    %297 = vmatpush1.bf16.msra.mxu0 %v280
    %298 = vmatprep.subr.bf16.mxu0 0
    %299 = vmatpush1.bf16.msra.mxu0 %v281
    %300 = vmatprep.subr.bf16.mxu0 0
    %301 = vmatpush1.bf16.msra.mxu0 %v282
    %302 = vmatprep.subr.bf16.mxu0 0
    %303 = vmatpush1.bf16.msra.mxu0 %v283
    %304 = vmatprep.subr.bf16.mxu0 0
    %305 = vmatpush1.bf16.msra.mxu0 %v284
    %306 = vmatprep.subr.bf16.mxu0 0
    %307 = vmatpush1.bf16.msra.mxu0 %v285
    %308 = vmatprep.subr.bf16.mxu0 0
    %309 = vmatpush1.bf16.msra.mxu0 %v286
    %310 = vmatprep.subr.bf16.mxu0 0
    %311 = vmatpush1.bf16.msra.mxu0 %v287
    %312 = vmatprep.subr.bf16.mxu0 0
    %313 = vmatpush1.bf16.msra.mxu0 0
    %314 = vmatprep.subr.bf16.mxu0 0
    %315 = vmatpush1.bf16.msra.mxu0 0
    %316 = vmatprep.subr.bf16.mxu0 0
    %317 = vmatpush1.bf16.msra.mxu0 0
    %318 = vmatprep.subr.bf16.mxu0 0
    %319 = vmatpush1.bf16.msra.mxu0 0
    %320 = vmatprep.subr.bf16.mxu0 0
    %321 = vmatpush1.bf16.msra.mxu0 0
    %322 = vmatprep.subr.bf16.mxu0 0
    %323 = vmatpush1.bf16.msra.mxu0 0
    %324 = vmatprep.subr.bf16.mxu0 0
    %325 = vmatpush1.bf16.msra.mxu0 0
    %326 = vmatprep.subr.bf16.mxu0 0
    %327 = vmatpush1.bf16.msra.mxu0 0
    %328 = vmatprep.mubr.bf16.mxu0 0
    %329 = vmatmul.mubr.bf16.gmra.mrb[0].mxu0 %v227
    %v330 = vpop.f32.mrb[0].mxu0
    %v331 = vadd.f32 %v247, %v330
    %v332 = vpop.f32.mrb[0].mxu0
    %v333 = vpop.f32.mrb[0].mxu0
    %v334 = vpop.f32.mrb[0].mxu0
    %335 = vdwg.mxu0
    %vm336 = vcmask 64512
    %337 = vst.msk [vmem:[#allocation7] sm:$0xff] %vm336, %v331
    %339 = vrot.lane.b32.xlu0 %v331, 120
    %v340 = vpop.permute.xlu0 %339
    %vm342 = vcmask 7168
    %343 = vst.msk [vmem:[%s6] sm:$0xff] %vm342, %v340
    // Predicated region
    $region30: #{tpu_custom_call.1} parent=1 // pred_check
      _
    $region31: #{tpu_custom_call.1} parent=1 // pred_check_branch
      %345 = sbr.rel (0) target = $region33
    $region32: #{tpu_custom_call.1} parent=1 // pred_region
      %s347 = ssub.s32 128, 128
      %348 = vsyncadd [#allocation4], %s347
      %s350 = sshll.u32 [#allocation7], 4
      %s351 = int_to_ptr.vmem [resolvable:$true] %s350
      %353 = dma.vmem_to_hbm [thread:$0]  %s351, 128, %s5, [#allocation4]
    $region33: #{tpu_custom_call.1} parent=1 // pred_fallthru
      _
    // Predicated region
    $region34: #{tpu_custom_call.1} parent=1 // pred_check
      _
    $region35: #{tpu_custom_call.1} parent=1 // pred_check_branch
      %355 = sbr.rel (0) target = $region37
    $region36: #{tpu_custom_call.1} parent=1 // pred_region
      _
    $region37: #{tpu_custom_call.1} parent=1 // pred_fallthru
      _
    // Predicated region
    $region38: #{tpu_custom_call.1} parent=1 // pred_check
      _
    $region39: #{tpu_custom_call.1} parent=1 // pred_check_branch
      %357 = sbr.rel (0) target = $region41
    $region40: #{tpu_custom_call.1} parent=1 // pred_region
      %358 = dma.done [#allocation4], 128
    $region41: #{tpu_custom_call.1} parent=1 // pred_fallthru
      _
    // Predicated region
    $region42: #{tpu_custom_call.1} parent=1 // pred_check
      _
    $region43: #{tpu_custom_call.1} parent=1 // pred_check_branch
      %360 = sbr.rel (0) target = $region45
    $region44: #{tpu_custom_call.1} parent=1 // pred_region
      _
    $region45: #{tpu_custom_call.1} parent=1 // pred_fallthru
      _
    %361 = vsyncpa [#allocation3], 1
    %362 = vsyncpa [#allocation6], 1
    %363 = vsyncpa [#allocation4], 1

</llo_original>
